<compile_context>
chip_gen: v7x
topology: tpu7x:2x2x1
jax: 0.10.0
libtpu: 0.0.40
codegen_flags: <defaults>
</compile_context>

<pallas_src>
import functools

import jax
import jax.numpy as jnp
from jax import lax
from jax.experimental import pallas as pl
from jax.experimental.pallas import tpu as pltpu

EPS = 1e-5
NEG_SLOPE = 0.2
LANE = 128


# --------------------------------------------------------------------------- #
# Helpers
# --------------------------------------------------------------------------- #
def _round_up(x, m):
    return (x + m - 1) // m * m


def _vmem_capacity_bytes():
    try:
        return int(pltpu.get_tpu_info().vmem_capacity_bytes)
    except Exception:  # unknown build -> assume the smallest (v7x per-TC)
        return 64 * 1024 * 1024


def _vmem_budgets():
    """(working-set budget, scoped vmem_limit_bytes), per generation."""
    cap = _vmem_capacity_bytes()
    if cap >= 100 * 1024 * 1024:          # v5e / v6e: 128 MiB physical VMEM
        return 64 * 1024 * 1024, 100 * 1024 * 1024
    return 28 * 1024 * 1024, 48 * 1024 * 1024   # v7x: 64 MiB physical VMEM


def _pick_tile_p(oh, ow_pad, q, c4, cout_pad, budget):
    """Largest output-row tile whose pass-1 working set fits the VMEM budget."""
    cap = _round_up(max(oh, 1), 8)
    for cand in (128, 64, 32, 16, 8, 4, 2, 1):
        if cand > cap:
            continue
        body = 2 * cand * q * c4 * 2                 # double-buffered input band
        halo = 2 * q * c4 * 2
        wts = 2 * 4 * c4 * cout_pad * 2              # resident weight slabs
        yout = 2 * cand * ow_pad * cout_pad * 2      # double-buffered bf16 out
        tmp = (cand * q * c4 * 2                     # shifted-row copy
               + 2 * cand * ow_pad * c4 * 2          # live operand slices
               + 3 * cand * ow_pad * cout_pad * 4)   # f32 acc / mask / diff
        if body + halo + wts + yout + tmp <= budget:
            return cand
    return 1


# --------------------------------------------------------------------------- #
# Pass 1: fused im2col + conv GEMM + BN partial statistics
# --------------------------------------------------------------------------- #
def _conv_stats_kernel(xb_ref, xh_ref, w_ref, y_ref, stats_ref, *,
                       tile_p, ow_pad, oh, ow):
    i = pl.program_id(1)

    body = xb_ref[...]                                   # [tile_p, Q, C4] bf16
    halo = xh_ref[...]                                   # [Q, C4]        bf16
    if tile_p > 1:
        rows1 = jnp.concatenate([body[1:], halo[None]], axis=0)
    else:
        rows1 = halo[None]

    # 4x4 stride-2 conv == 2x2 stride-1 conv over the space-to-depth input:
    # sum of 4 shifted matmuls, each contracting the full C4 = 4*Cin depth.
    acc = None
    for a, rows in ((0, body), (1, rows1)):
        for b in (0, 1):
            opnd = rows[:, b:b + ow_pad, :]               # [tile_p, OW_pad, C4]
            opnd = opnd.reshape(tile_p * ow_pad, opnd.shape[-1])
            part = jnp.dot(opnd, w_ref[2 * a + b],
                           preferred_element_type=jnp.float32)
            acc = part if acc is None else acc + part

    cout_pad = acc.shape[-1]
    y3 = acc.reshape(tile_p, ow_pad, cout_pad)

    # Zero the rows/cols that only exist because of tile padding so they do
    # not pollute the batch statistics (they are sliced away in the wrapper).
    oh_idx = i * tile_p + lax.broadcasted_iota(jnp.int32, (tile_p, ow_pad, 1), 0)
    ow_idx = lax.broadcasted_iota(jnp.int32, (tile_p, ow_pad, 1), 1)
    valid = (oh_idx < oh) & (ow_idx < ow)
    y3 = jnp.where(valid, y3, 0.0)

    y_ref[...] = y3.astype(y_ref.dtype)                  # bf16 intermediate

    # Per-tile BN partials: sum + per-tile-centered sum of squares (combined
    # via Chan's parallel-variance formula in the wrapper).
    cnt = (jnp.minimum(oh - i * tile_p, tile_p) * ow).astype(jnp.float32)
    s_t = jnp.sum(y3, axis=(0, 1), keepdims=True)        # [1, 1, C]
    diff = y3 - s_t / cnt
    ss_t = jnp.sum(jnp.where(valid, diff * diff, 0.0), axis=(0, 1), keepdims=True)
    stats_ref[...] = jnp.concatenate(
        [s_t.reshape(1, cout_pad), ss_t.reshape(1, cout_pad)], axis=0)


# --------------------------------------------------------------------------- #
# Pass 2: affine BatchNorm (precomputed scale/shift) + LeakyReLU(0.2)
# --------------------------------------------------------------------------- #
def _bn_lrelu_kernel(y_ref, scale_ref, shift_ref, out_ref):
    z = y_ref[...].astype(jnp.float32) * scale_ref[...] + shift_ref[...]
    # max(z, 0.2*z) == LeakyReLU(0.2): single VALU max instead of cmp+select.
    out_ref[...] = jnp.maximum(z, NEG_SLOPE * z)


# --------------------------------------------------------------------------- #
# Wrapper
# --------------------------------------------------------------------------- #
def cnn_block_forward(x_nchw, w_oihw, gamma, beta, stride=2):
    N, Cin, H, W = x_nchw.shape
    Cout, cin_w, kh, kw = w_oihw.shape
    assert cin_w == Cin and kh == 4 and kw == 4
    # nn.Conv2d default padding=0 -> padding_mode='reflect' never applies.
    assert stride == 2, "fused space-to-depth path assumes stride == 2"
    # TODO(synk): add a stride=1 variant (final pix2pix CNNBlock) as a 4x4
    # stride-1 shifted-matmul path; only stride=2 is implemented here.

    OH = (H - kh) // stride + 1
    OW = (W - kw) // stride + 1
    assert OH >= 1 and OW >= 1

    cin_pad = _round_up(Cin, 32)           # 4*cin_pad % 128 == 0 (lane-aligned K)
    c4 = 4 * cin_pad
    cout_pad = _round_up(Cout, LANE)
    ow_pad = _round_up(OW, 8)
    q = ow_pad + 1                          # +1 column of halo for the b=1 shift

    budget, vmem_limit = _vmem_budgets()
    tile_p = _pick_tile_p(OH, ow_pad, q, c4, cout_pad, budget)
    if N == 1:  # keep >= 2 programs so both v7x TensorCores stay busy
        while tile_p > 1 and _round_up(OH, tile_p) // tile_p < 2:
            tile_p = max(1, tile_p // 2)
    oh_pad = _round_up(OH, tile_p)
    grid_p = oh_pad // tile_p
    p_tot = oh_pad + 1                      # row pairs incl. one halo pair

    # ---- space-to-depth input, built directly from NCHW (single transpose) --
    ht, wt = 2 * p_tot, 2 * q
    xp = x_nchw[:, :, :min(H, ht), :min(W, wt)].astype(jnp.bfloat16)
    xp = jnp.pad(xp, ((0, 0), (0, cin_pad - Cin),
                      (0, ht - xp.shape[2]), (0, wt - xp.shape[3])))
    xs = xp.reshape(N, cin_pad, p_tot, 2, q, 2)           # (n, ci, p, di, q, dj)
    xs = jnp.transpose(xs, (0, 2, 4, 3, 5, 1)).reshape(N, p_tot, q, c4)

    # ---- weights: [Cout, Cin, 4, 4] -> 4 slabs ws[2a+b, (di,dj,ci), co] ------
    wp = jnp.pad(w_oihw.astype(jnp.bfloat16),
                 ((0, 0), (0, cin_pad - Cin), (0, 0), (0, 0)))
    ws = wp.reshape(Cout, cin_pad, 2, 2, 2, 2)            # (co, ci, a, di, b, dj)
    ws = jnp.transpose(ws, (2, 4, 3, 5, 1, 0)).reshape(4, c4, Cout)
    ws = jnp.pad(ws, ((0, 0), (0, 0), (0, cout_pad - Cout)))

    # ---- pass 1: fused im2col + conv GEMM + BN partials ----------------------
    kernel1 = functools.partial(_conv_stats_kernel, tile_p=tile_p,
                                ow_pad=ow_pad, oh=OH, ow=OW)
    gemm_cost = pl.CostEstimate(
        flops=8 * N * oh_pad * ow_pad * c4 * cout_pad,
        transcendentals=0,
        bytes_accessed=(N * p_tot * q * c4 * 2 + 4 * c4 * cout_pad * 2
                        + N * oh_pad * ow_pad * cout_pad * 2
                        + N * grid_p * 2 * cout_pad * 4),
    )
    y, stats = pl.pallas_call(
        kernel1,
        out_shape=(
            jax.ShapeDtypeStruct((N, oh_pad, ow_pad, cout_pad), jnp.bfloat16),
            jax.ShapeDtypeStruct((N, grid_p, 2, cout_pad), jnp.float32),
        ),
        grid_spec=pltpu.PrefetchScalarGridSpec(
            num_scalar_prefetch=0,
            grid=(N, grid_p),
            in_specs=[
                # body: tile_p row pairs of the space-to-depth input
                pl.BlockSpec((None, tile_p, q, c4), lambda n, i: (n, i, 0, 0)),
                # halo: single extra pair (block size 1 -> element offset)
                pl.BlockSpec((None, None, q, c4),
                             lambda n, i: (n, i * tile_p + tile_p, 0, 0)),
                # weights: constant block index -> DMA'd once, VMEM-resident
                pl.BlockSpec((4, c4, cout_pad), lambda n, i: (0, 0, 0)),
            ],
            out_specs=[
                pl.BlockSpec((None, tile_p, ow_pad, cout_pad),
                             lambda n, i: (n, i, 0, 0)),
                pl.BlockSpec((None, None, 2, cout_pad),
                             lambda n, i: (n, i, 0, 0)),
            ],
        ),
        compiler_params=pltpu.CompilerParams(
            dimension_semantics=("parallel", "parallel"),
            vmem_limit_bytes=vmem_limit,
        ),
        cost_estimate=gemm_cost,
    )(xs, xs, ws)

    # ---- per-channel BN stats (Chan's parallel-variance combination) ---------
    m_true = N * OH * OW
    counts = (jnp.minimum(OH - jnp.arange(grid_p) * tile_p, tile_p) * OW
              ).astype(jnp.float32)                       # valid rows per tile
    cnt = counts[None, :, None]                           # [1, grid_p, 1]
    s_g = stats[:, :, 0, :]                               # [N, grid_p, C]
    ss_g = stats[:, :, 1, :]
    mean = jnp.sum(s_g, axis=(0, 1)) / m_true             # [C]
    mu_g = s_g / cnt
    ss_tot = jnp.sum(ss_g, axis=(0, 1)) + jnp.sum(cnt * (mu_g - mean) ** 2,
                                                  axis=(0, 1))
    var = jnp.maximum(ss_tot / m_true, 0.0)                # biased (training BN)
    gamma_p = jnp.pad(gamma.astype(jnp.float32), (0, cout_pad - Cout))
    beta_p = jnp.pad(beta.astype(jnp.float32), (0, cout_pad - Cout))
    inv_std = lax.rsqrt(var + EPS)
    scale = (gamma_p * inv_std).reshape(1, 1, cout_pad)
    shift = (beta_p - mean * gamma_p * inv_std).reshape(1, 1, cout_pad)

    # ---- pass 2: affine BN + LeakyReLU over lane-dense tiles ------------------
    out4 = pl.pallas_call(
        _bn_lrelu_kernel,
        out_shape=jax.ShapeDtypeStruct((N, oh_pad, ow_pad, cout_pad), jnp.float32),
        grid_spec=pltpu.PrefetchScalarGridSpec(
            num_scalar_prefetch=0,
            grid=(N, grid_p),
            in_specs=[
                pl.BlockSpec((None, tile_p, ow_pad, cout_pad),
                             lambda n, i: (n, i, 0, 0)),
                pl.BlockSpec((1, 1, cout_pad), lambda n, i: (0, 0, 0)),
                pl.BlockSpec((1, 1, cout_pad), lambda n, i: (0, 0, 0)),
            ],
            out_specs=pl.BlockSpec((None, tile_p, ow_pad, cout_pad),
                                   lambda n, i: (n, i, 0, 0)),
        ),
        compiler_params=pltpu.CompilerParams(
            dimension_semantics=("parallel", "parallel"),
            vmem_limit_bytes=vmem_limit,
        ),
        cost_estimate=pl.CostEstimate(
            flops=4 * N * oh_pad * ow_pad * cout_pad,
            transcendentals=0,
            bytes_accessed=N * oh_pad * ow_pad * cout_pad * 6 + 2 * cout_pad * 4),
    )(y, scale, shift)

    out = out4[:, :OH, :OW, :Cout]
    # TODO(synk): when chaining CNNBlocks, keep this NHWC activation layout and
    # drop the exit transpose (it is one extra HBM read+write per block).
    return jnp.transpose(out, (0, 3, 1, 2))


# --------------------------------------------------------------------------- #
# Pure-JAX reference for correctness checking
# --------------------------------------------------------------------------- #
def _reference(x_nchw, w_oihw, gamma, beta, stride=2):
    x = jnp.transpose(x_nchw, (0, 2, 3, 1)).astype(jnp.float32)
    w = jnp.transpose(w_oihw, (2, 3, 1, 0)).astype(jnp.float32)
    y = lax.conv_general_dilated(
        x, w, window_strides=(stride, stride), padding="VALID",
        dimension_numbers=("NHWC", "HWIO", "NHWC"))
    mean = jnp.mean(y, axis=(0, 1, 2), keepdims=True)
    var = jnp.mean((y - mean) ** 2, axis=(0, 1, 2), keepdims=True)
    yb = (y - mean) * lax.rsqrt(var + EPS) * gamma + beta
    ya = jnp.where(yb >= 0, yb, NEG_SLOPE * yb)
    return jnp.transpose(ya, (0, 3, 1, 2))


if __name__ == "__main__":
    key = jax.random.PRNGKey(0)
    k_x, k_w = jax.random.split(key)

    N, Cin, H, W = 2, 4, 16, 16
    Cout, stride = 8, 2
    OH = (H - 4) // stride + 1
    OW = (W - 4) // stride + 1

    x = jax.random.normal(k_x, (N, Cin, H, W), dtype=jnp.float32)
    w = 0.1 * jax.random.normal(k_w, (Cout, Cin, 4, 4), dtype=jnp.float32)
    gamma = jnp.ones((Cout,), dtype=jnp.float32)   # BatchNorm2d default init
    beta = jnp.zeros((Cout,), dtype=jnp.float32)

    out = jax.block_until_ready(cnn_block_forward(x, w, gamma, beta, stride=stride))
    assert out.shape == (N, Cout, OH, OW)

    # bf16 MXU operands + bf16 conv intermediate vs an all-f32 reference.
    ref = _reference(x, w, gamma, beta, stride=stride)
    max_err = float(jnp.max(jnp.abs(out - ref)))
    assert jnp.allclose(out, ref, atol=5e-2, rtol=5e-2), max_err

    print("KERNEL_OK")
</pallas_src>

<mosaic_0001>
module attributes {stable_mosaic.version = 11 : i64} {
  func.func @_conv_stats_kernel(%arg0: i32, %arg1: i32, %arg2: memref<1x8x9x128xbf16, #tpu.memory_space<vmem>>, %arg3: memref<1x1x9x128xbf16, #tpu.memory_space<vmem>>, %arg4: memref<4x128x128xbf16, #tpu.memory_space<vmem>>, %arg5: memref<1x8x8x128xbf16, #tpu.memory_space<vmem>>, %arg6: memref<1x1x2x128xf32, #tpu.memory_space<vmem>>) attributes {dimension_semantics = [#tpu.dimension_semantics<parallel>, #tpu.dimension_semantics<parallel>], iteration_bounds = array<i64: 2, 1>, scalar_prefetch = 0 : i64, scratch_operands = 0 : i64, tpu.core_type = #tpu.core_type<tc>, window_params = [{transform_indices = @transform_0, window_bounds = array<i64: 1, 8, 9, 128>}, {transform_indices = @transform_1, window_bounds = array<i64: 1, 1, 9, 128>}, {pipeline_mode = #tpu.pipeline_mode<synchronous>, transform_indices = @transform_2, window_bounds = array<i64: 4, 128, 128>}, {transform_indices = @transform_3, window_bounds = array<i64: 1, 8, 8, 128>}, {transform_indices = @transform_4, window_bounds = array<i64: 1, 1, 2, 128>}]} {
    %c0 = arith.constant 0 : index
    %c0_0 = arith.constant 0 : index
    %c0_1 = arith.constant 0 : index
    %c0_2 = arith.constant 0 : index
    %0 = vector.load %arg2[%c0, %c0_0, %c0_1, %c0_2] : memref<1x8x9x128xbf16, #tpu.memory_space<vmem>>, vector<1x8x9x128xbf16>
    %1 = vector.shape_cast %0 : vector<1x8x9x128xbf16> to vector<8x9x128xbf16>
    %c0_3 = arith.constant 0 : index
    %c0_4 = arith.constant 0 : index
    %c0_5 = arith.constant 0 : index
    %c0_6 = arith.constant 0 : index
    %2 = vector.load %arg3[%c0_3, %c0_4, %c0_5, %c0_6] : memref<1x1x9x128xbf16, #tpu.memory_space<vmem>>, vector<1x1x9x128xbf16>
    %3 = vector.shape_cast %2 : vector<1x1x9x128xbf16> to vector<9x128xbf16>
    %4 = vector.extract_strided_slice %1 {offsets = [1, 0, 0], sizes = [7, 9, 128], strides = [1, 1, 1]} : vector<8x9x128xbf16> to vector<7x9x128xbf16>
    %5 = vector.shape_cast %3 : vector<9x128xbf16> to vector<1x9x128xbf16>
    %6 = tpu.concatenate %4, %5 in 0 : vector<7x9x128xbf16>, vector<1x9x128xbf16> -> vector<8x9x128xbf16>
    %7 = vector.extract_strided_slice %1 {offsets = [0, 0, 0], sizes = [8, 8, 128], strides = [1, 1, 1]} : vector<8x9x128xbf16> to vector<8x8x128xbf16>
    %8 = vector.shape_cast %7 : vector<8x8x128xbf16> to vector<64x128xbf16>
    %c0_7 = arith.constant 0 : index
    %c0_8 = arith.constant 0 : index
    %c0_9 = arith.constant 0 : index
    %9 = vector.load %arg4[%c0_7, %c0_8, %c0_9] : memref<4x128x128xbf16, #tpu.memory_space<vmem>>, vector<1x128x128xbf16>
    %10 = vector.shape_cast %9 : vector<1x128x128xbf16> to vector<128x128xbf16>
    %cst = arith.constant dense<0.000000e+00> : vector<64x128xf32>
    %11 = tpu.matmul %8, %10, %cst {dimension_numbers = #tpu.dot_dimension_numbers<[1], [0], [0], [1], [0, 0, 1, 1], [], []>} : vector<64x128xbf16>, vector<128x128xbf16>, vector<64x128xf32> -> vector<64x128xf32>
    %12 = vector.extract_strided_slice %1 {offsets = [0, 1, 0], sizes = [8, 8, 128], strides = [1, 1, 1]} : vector<8x9x128xbf16> to vector<8x8x128xbf16>
    %13 = vector.shape_cast %12 : vector<8x8x128xbf16> to vector<64x128xbf16>
    %c1 = arith.constant 1 : index
    %c0_10 = arith.constant 0 : index
    %c0_11 = arith.constant 0 : index
    %14 = vector.load %arg4[%c1, %c0_10, %c0_11] : memref<4x128x128xbf16, #tpu.memory_space<vmem>>, vector<1x128x128xbf16>
    %15 = vector.shape_cast %14 : vector<1x128x128xbf16> to vector<128x128xbf16>
    %cst_12 = arith.constant dense<0.000000e+00> : vector<64x128xf32>
    %16 = tpu.matmul %13, %15, %cst_12 {dimension_numbers = #tpu.dot_dimension_numbers<[1], [0], [0], [1], [0, 0, 1, 1], [], []>} : vector<64x128xbf16>, vector<128x128xbf16>, vector<64x128xf32> -> vector<64x128xf32>
    %17 = arith.addf %11, %16 : vector<64x128xf32>
    %18 = vector.extract_strided_slice %6 {offsets = [0, 0, 0], sizes = [8, 8, 128], strides = [1, 1, 1]} : vector<8x9x128xbf16> to vector<8x8x128xbf16>
    %19 = vector.shape_cast %18 : vector<8x8x128xbf16> to vector<64x128xbf16>
    %c2 = arith.constant 2 : index
    %c0_13 = arith.constant 0 : index
    %c0_14 = arith.constant 0 : index
    %20 = vector.load %arg4[%c2, %c0_13, %c0_14] : memref<4x128x128xbf16, #tpu.memory_space<vmem>>, vector<1x128x128xbf16>
    %21 = vector.shape_cast %20 : vector<1x128x128xbf16> to vector<128x128xbf16>
    %cst_15 = arith.constant dense<0.000000e+00> : vector<64x128xf32>
    %22 = tpu.matmul %19, %21, %cst_15 {dimension_numbers = #tpu.dot_dimension_numbers<[1], [0], [0], [1], [0, 0, 1, 1], [], []>} : vector<64x128xbf16>, vector<128x128xbf16>, vector<64x128xf32> -> vector<64x128xf32>
    %23 = arith.addf %17, %22 : vector<64x128xf32>
    %24 = vector.extract_strided_slice %6 {offsets = [0, 1, 0], sizes = [8, 8, 128], strides = [1, 1, 1]} : vector<8x9x128xbf16> to vector<8x8x128xbf16>
    %25 = vector.shape_cast %24 : vector<8x8x128xbf16> to vector<64x128xbf16>
    %c3 = arith.constant 3 : index
    %c0_16 = arith.constant 0 : index
    %c0_17 = arith.constant 0 : index
    %26 = vector.load %arg4[%c3, %c0_16, %c0_17] : memref<4x128x128xbf16, #tpu.memory_space<vmem>>, vector<1x128x128xbf16>
    %27 = vector.shape_cast %26 : vector<1x128x128xbf16> to vector<128x128xbf16>
    %cst_18 = arith.constant dense<0.000000e+00> : vector<64x128xf32>
    %28 = tpu.matmul %25, %27, %cst_18 {dimension_numbers = #tpu.dot_dimension_numbers<[1], [0], [0], [1], [0, 0, 1, 1], [], []>} : vector<64x128xbf16>, vector<128x128xbf16>, vector<64x128xf32> -> vector<64x128xf32>
    %29 = arith.addf %23, %28 : vector<64x128xf32>
    %30 = vector.shape_cast %29 : vector<64x128xf32> to vector<8x8x128xf32>
    %c8_i32 = arith.constant 8 : i32
    %31 = arith.muli %arg1, %c8_i32 : i32
    %32 = tpu.iota {dimensions = array<i32: 0>} : vector<8x8x1xi32>
    %33 = vector.broadcast %31 : i32 to vector<8x8x1xi32>
    %34 = arith.addi %33, %32 : vector<8x8x1xi32>
    %35 = tpu.iota {dimensions = array<i32: 1>} : vector<8x8x1xi32>
    %c7_i32 = arith.constant 7 : i32
    %36 = vector.broadcast %c7_i32 : i32 to vector<8x8x1xi32>
    %37 = arith.cmpi slt, %34, %36 : vector<8x8x1xi32>
    %c7_i32_19 = arith.constant 7 : i32
    %38 = vector.broadcast %c7_i32_19 : i32 to vector<8x8x1xi32>
    %39 = arith.cmpi slt, %35, %38 : vector<8x8x1xi32>
    %40 = arith.andi %37, %39 : vector<8x8x1xi1>
    %cst_20 = arith.constant 0.000000e+00 : f32
    %41 = vector.shape_cast %40 : vector<8x8x1xi1> to vector<8x8x1xi1>
    %42 = vector.broadcast %41 : vector<8x8x1xi1> to vector<8x8x128xi1>
    %43 = vector.broadcast %cst_20 : f32 to vector<8x8x128xf32>
    %44 = arith.select %42, %30, %43 : vector<8x8x128xi1>, vector<8x8x128xf32>
    %45 = arith.truncf %44 : vector<8x8x128xf32> to vector<8x8x128xbf16>
    %c0_21 = arith.constant 0 : index
    %c0_22 = arith.constant 0 : index
    %c0_23 = arith.constant 0 : index
    %c0_24 = arith.constant 0 : index
    %46 = vector.load %arg5[%c0_21, %c0_22, %c0_23, %c0_24] : memref<1x8x8x128xbf16, #tpu.memory_space<vmem>>, vector<1x8x8x128xbf16>
    %47 = vector.shape_cast %46 : vector<1x8x8x128xbf16> to vector<8x8x128xbf16>
    %48 = vector.shape_cast %45 : vector<8x8x128xbf16> to vector<1x8x8x128xbf16>
    tpu.vector_store %arg5[%c0_21, %c0_22, %c0_23, %c0_24], %48 {strides = array<i32>} : memref<1x8x8x128xbf16, #tpu.memory_space<vmem>>, vector<1x8x8x128xbf16>,
    %c8_i32_25 = arith.constant 8 : i32
    %49 = arith.muli %arg1, %c8_i32_25 : i32
    %c7_i32_26 = arith.constant 7 : i32
    %50 = arith.subi %c7_i32_26, %49 : i32
    %c8_i32_27 = arith.constant 8 : i32
    %51 = arith.minsi %50, %c8_i32_27 : i32
    %c7_i32_28 = arith.constant 7 : i32
    %52 = arith.muli %51, %c7_i32_28 : i32
    %53 = arith.sitofp %52 : i32 to f32
    %cst_29 = arith.constant dense<0.000000e+00> : vector<128xf32>
    %54 = vector.multi_reduction <add>, %44, %cst_29 [0, 1] : vector<8x8x128xf32> to vector<128xf32>
    %55 = vector.shape_cast %54 : vector<128xf32> to vector<1x1x128xf32>
    %56 = vector.broadcast %53 : f32 to vector<1x1x128xf32>
    %57 = arith.divf %55, %56 : vector<1x1x128xf32>
    %58 = vector.broadcast %57 : vector<1x1x128xf32> to vector<8x8x128xf32>
    %59 = arith.subf %44, %58 : vector<8x8x128xf32>
    %60 = arith.mulf %59, %59 : vector<8x8x128xf32>
    %cst_30 = arith.constant 0.000000e+00 : f32
    %61 = vector.shape_cast %40 : vector<8x8x1xi1> to vector<8x8x1xi1>
    %62 = vector.broadcast %61 : vector<8x8x1xi1> to vector<8x8x128xi1>
    %63 = vector.broadcast %cst_30 : f32 to vector<8x8x128xf32>
    %64 = arith.select %62, %60, %63 : vector<8x8x128xi1>, vector<8x8x128xf32>
    %cst_31 = arith.constant dense<0.000000e+00> : vector<128xf32>
    %65 = vector.multi_reduction <add>, %64, %cst_31 [0, 1] : vector<8x8x128xf32> to vector<128xf32>
    %66 = vector.shape_cast %65 : vector<128xf32> to vector<1x1x128xf32>
    %67 = vector.shape_cast %55 : vector<1x1x128xf32> to vector<1x128xf32>
    %68 = vector.shape_cast %66 : vector<1x1x128xf32> to vector<1x128xf32>
    %69 = tpu.concatenate %67, %68 in 0 : vector<1x128xf32>, vector<1x128xf32> -> vector<2x128xf32>
    %c0_32 = arith.constant 0 : index
    %c0_33 = arith.constant 0 : index
    %c0_34 = arith.constant 0 : index
    %c0_35 = arith.constant 0 : index
    %70 = vector.load %arg6[%c0_32, %c0_33, %c0_34, %c0_35] : memref<1x1x2x128xf32, #tpu.memory_space<vmem>>, vector<1x1x2x128xf32>
    %71 = vector.shape_cast %70 : vector<1x1x2x128xf32> to vector<2x128xf32>
    %72 = vector.shape_cast %69 : vector<2x128xf32> to vector<1x1x2x128xf32>
    tpu.vector_store %arg6[%c0_32, %c0_33, %c0_34, %c0_35], %72 {strides = array<i32>} : memref<1x1x2x128xf32, #tpu.memory_space<vmem>>, vector<1x1x2x128xf32>,
    return
  }
  func.func @transform_0(%arg0: i32, %arg1: i32) -> (i32, i32, i32, i32) {
    %c0_i32 = arith.constant 0 : i32
    %c0_i32_0 = arith.constant 0 : i32
    %c0_i32_1 = arith.constant 0 : i32
    return %arg0, %arg1, %c0_i32, %c0_i32_0 : i32, i32, i32, i32
  }
  func.func @transform_1(%arg0: i32, %arg1: i32) -> (i32, i32, i32, i32) {
    %c8_i32 = arith.constant 8 : i32
    %0 = arith.muli %arg1, %c8_i32 : i32
    %c8_i32_0 = arith.constant 8 : i32
    %1 = arith.addi %0, %c8_i32_0 : i32
    %c0_i32 = arith.constant 0 : i32
    %c0_i32_1 = arith.constant 0 : i32
    %c0_i32_2 = arith.constant 0 : i32
    return %arg0, %1, %c0_i32, %c0_i32_1 : i32, i32, i32, i32
  }
  func.func @transform_2(%arg0: i32, %arg1: i32) -> (i32, i32, i32) {
    %c0_i32 = arith.constant 0 : i32
    %c0_i32_0 = arith.constant 0 : i32
    %c0_i32_1 = arith.constant 0 : i32
    %c0_i32_2 = arith.constant 0 : i32
    return %c0_i32, %c0_i32_0, %c0_i32_1 : i32, i32, i32
  }
  func.func @transform_3(%arg0: i32, %arg1: i32) -> (i32, i32, i32, i32) {
    %c0_i32 = arith.constant 0 : i32
    %c0_i32_0 = arith.constant 0 : i32
    %c0_i32_1 = arith.constant 0 : i32
    return %arg0, %arg1, %c0_i32, %c0_i32_0 : i32, i32, i32, i32
  }
  func.func @transform_4(%arg0: i32, %arg1: i32) -> (i32, i32, i32, i32) {
    %c0_i32 = arith.constant 0 : i32
    %c0_i32_0 = arith.constant 0 : i32
    %c0_i32_1 = arith.constant 0 : i32
    return %arg0, %arg1, %c0_i32, %c0_i32_0 : i32, i32, i32, i32
  }
}

</mosaic_0001>

<llo_original>
// kernel: tpu_custom_call.1
$region0: #{tpu_custom_call.1}
  #allocation0 [shape = 'u32[]', space=smem, size = 0x4, offset = 0x4, fixed_abs, tag = 'smem constant byte address 0x4 - core index']
  #allocation1 [shape = 'u32[144,128]{1,0:T(1,128)}', space=vmem, size = 0x12000, scoped, tag = 'internal scratch']
  %s0 = inlined_call_operand.vmem [shape: bf16[2,9,9,128], index: 0, kind: input, shape index: {}]
  %s1 = inlined_call_operand.vmem [shape: bf16[2,9,9,128], index: 1, kind: input, shape index: {}]
  %s2 = inlined_call_operand.vmem [shape: bf16[4,128,128], index: 2, kind: input, shape index: {}]
  %s3 = inlined_call_operand.hbm [shape: bf16[2,8,8,128], index: 3, kind: output, shape index: {0}]
  %s4 = inlined_call_operand.hbm [shape: f32[2,1,2,128], index: 4, kind: output, shape index: {1}]
  %5 = xla_tuple %s3, %s4
  %s6 = sld [smem:[#allocation0]]
  $region53: #{tpu_custom_call.1} parent=0
    _
  %s8 = ssub.s32 1, %s6
  %s9 = scalar_select 0, %s8, %s6
  $region1: #{tpu_custom_call.1} parent=0
    #allocation2 [shape = 'u8[32768]{0}', space=vmem, size = 0x8000, scoped, tag = 'output window, operand 0']
    #allocation3 [shape = 's32[2]{0}', space=sflag, size = 0x8, scoped, tag = 'scoped memory for tpu_custom_call.1']
    #allocation4 [shape = 'u8[2048]{0}', space=vmem, size = 0x800, scoped, tag = 'output window, operand 1']
    #allocation5 [shape = 's32[2]{0}', space=sflag, size = 0x8, scoped, tag = 'scoped memory for tpu_custom_call.1']
    %10 = vsyncpa [#allocation3], 0
    %s11 = scalar_lea.sflag [#allocation3], 1
    %12 = vsyncpa %s11, 0
    %13 = vsyncpa [#allocation5], 0
    %s14 = scalar_lea.sflag [#allocation5], 1
    %15 = vsyncpa %s14, 0
    loop: start=0, step=1, limit=4
    $region2: #{tpu_custom_call.1} parent=1 // loop_pre_header
      _
    $region3: #{tpu_custom_call.1} parent=1 // loop_header
      %s17 = sphi 0, %s21
      %p18 = scmp.ge.s32.totalorder %s17, 4
      %s24 = sphi 0, %s36
      %s25 = sphi 0, %s32
      %s26 = sphi 0, %s24
      %s27 = sphi 0, %s25
      %s28 = sphi 0, %s26
      %s29 = sphi 0, %s27
      %s41 = sphi 0, %s43
      %s44 = sphi 0, %s41
      %s45 = sphi 0, %s44
      %s61 = sphi 0, %s45
      %s73 = sphi 0, %s75
      %s76 = sphi 0, %s73
      %s77 = sphi 0, %s76
      %s93 = sphi 0, %s77
      %s97 = sphi 0, %s97
      %s99 = sphi 0, %s97
      %s100 = sphi 0, %s99
      %s114 = sphi 0, %s100
      %s122 = sphi 0, %s124
      %s125 = sphi 0, %s122
      %s126 = sphi 0, %s125
      %s142 = sphi 0, %s126
      %s150 = sphi 0, %s152
      %s153 = sphi 0, %s150
      %s154 = sphi 0, %s153
      %s170 = sphi 0, %s154
    $region4: #{tpu_custom_call.1} parent=1 // loop_header_branch
      %20 = sbr.rel (%p18) target = $region8
    $region5: #{tpu_custom_call.1} parent=1 // loop_body
      %s22 = ssub.s32 %s17, 1
      %s23 = ssub.s32 %s17, 2
      %s30 = sadd.s32 1, %s25
      %p31 = scmp.ge.s32.totalorder %s30, 1
      %s32 = scalar_select %p31, 0, %s30
      %s33 = sadd.s32 1, %s24
      %s34 = scalar_select %p31, %s33, %s24
      %p35 = scmp.ge.s32.totalorder %s34, 2
      %s36 = scalar_select %p35, 0, %s34
      %s37 = ssub.s32 %s24, %s36
      %s38 = ssub.s32 %s25, %s32
      %s39 = sor.u32 %s37, %s38
      %p40 = scmp.eq.s32.totalorder %s39, 0
      %s42 = sadd.s32 %s41, 1
      %s43 = scalar_select %p40, %s41, %s42
      %p46 = pneg %p40
      %p47 = scmp.eq.s32.totalorder %s17, 1
      %p48 = por %p46, %p47
      %p49 = scmp.ne.s32.totalorder %s41, %s44
      %p50 = scmp.eq.s32.totalorder %s17, 0
      %p51 = por %p49, %p50
      %p52 = scmp.ne.s32.totalorder %s41, %s44
      %p53 = scmp.eq.s32.totalorder %s22, 1
      %p54 = por %p52, %p53
      %p55 = scmp.ne.s32.totalorder %s44, %s45
      %p56 = scmp.eq.s32.totalorder %s22, 0
      %p57 = por %p55, %p56
      %p58 = scmp.ne.s32.totalorder %s44, %s45
      %p59 = scmp.eq.s32.totalorder %s23, 1
      %p60 = por %p58, %p59
      %p62 = scmp.ne.s32.totalorder %s45, %s61
      %p63 = scmp.eq.s32.totalorder %s23, 0
      %p64 = por %p62, %p63
      %s65 = smul.u32 %s25, 8
      %s66 = sadd.s32 %s65, 8
      %s67 = smul.u32 %s32, 8
      %s68 = sadd.s32 %s67, 8
      %s69 = ssub.s32 %s24, %s36
      %s70 = ssub.s32 %s66, %s68
      %s71 = sor.u32 %s69, %s70
      %p72 = scmp.eq.s32.totalorder %s71, 0
      %s74 = sadd.s32 %s73, 1
      %s75 = scalar_select %p72, %s73, %s74
      %p78 = pneg %p72
      %p79 = scmp.eq.s32.totalorder %s17, 1
      %p80 = por %p78, %p79
      %p81 = scmp.ne.s32.totalorder %s73, %s76
      %p82 = scmp.eq.s32.totalorder %s17, 0
      %p83 = por %p81, %p82
      %p84 = scmp.ne.s32.totalorder %s73, %s76
      %p85 = scmp.eq.s32.totalorder %s22, 1
      %p86 = por %p84, %p85
      %p87 = scmp.ne.s32.totalorder %s76, %s77
      %p88 = scmp.eq.s32.totalorder %s22, 0
      %p89 = por %p87, %p88
      %p90 = scmp.ne.s32.totalorder %s76, %s77
      %p91 = scmp.eq.s32.totalorder %s23, 1
      %p92 = por %p90, %p91
      %p94 = scmp.ne.s32.totalorder %s77, %s93
      %p95 = scmp.eq.s32.totalorder %s23, 0
      %p96 = por %p94, %p95
      %s98 = sadd.s32 %s97, 1
      %p101 = scmp.eq.s32.totalorder %s17, 1
      %p102 = scmp.ne.s32.totalorder %s97, %s99
      %p103 = scmp.eq.s32.totalorder %s17, 0
      %p104 = por %p102, %p103
      %p105 = scmp.ne.s32.totalorder %s97, %s99
      %p106 = scmp.eq.s32.totalorder %s22, 1
      %p107 = por %p105, %p106
      %p108 = scmp.ne.s32.totalorder %s99, %s100
      %p109 = scmp.eq.s32.totalorder %s22, 0
      %p110 = por %p108, %p109
      %p111 = scmp.ne.s32.totalorder %s99, %s100
      %p112 = scmp.eq.s32.totalorder %s23, 1
      %p113 = por %p111, %p112
      %p115 = scmp.ne.s32.totalorder %s100, %s114
      %p116 = scmp.eq.s32.totalorder %s23, 0
      %p117 = por %p115, %p116
      %s118 = ssub.s32 %s24, %s36
      %s119 = ssub.s32 %s25, %s32
      %s120 = sor.u32 %s118, %s119
      %p121 = scmp.eq.s32.totalorder %s120, 0
      %s123 = sadd.s32 %s122, 1
      %s124 = scalar_select %p121, %s122, %s123
      %p127 = pneg %p121
      %p128 = scmp.eq.s32.totalorder %s17, 1
      %p129 = por %p127, %p128
      %p130 = scmp.ne.s32.totalorder %s122, %s125
      %p131 = scmp.eq.s32.totalorder %s17, 0
      %p132 = por %p130, %p131
      %p133 = scmp.ne.s32.totalorder %s122, %s125
      %p134 = scmp.eq.s32.totalorder %s22, 1
      %p135 = por %p133, %p134
      %p136 = scmp.ne.s32.totalorder %s125, %s126
      %p137 = scmp.eq.s32.totalorder %s22, 0
      %p138 = por %p136, %p137
      %p139 = scmp.ne.s32.totalorder %s125, %s126
      %p140 = scmp.eq.s32.totalorder %s23, 1
      %p141 = por %p139, %p140
      %p143 = scmp.ne.s32.totalorder %s126, %s142
      %p144 = scmp.eq.s32.totalorder %s23, 0
      %p145 = por %p143, %p144
      %s146 = ssub.s32 %s24, %s36
      %s147 = ssub.s32 %s25, %s32
      %s148 = sor.u32 %s146, %s147
      %p149 = scmp.eq.s32.totalorder %s148, 0
      %s151 = sadd.s32 %s150, 1
      %s152 = scalar_select %p149, %s150, %s151
      %p155 = pneg %p149
      %p156 = scmp.eq.s32.totalorder %s17, 1
      %p157 = por %p155, %p156
      %p158 = scmp.ne.s32.totalorder %s150, %s153
      %p159 = scmp.eq.s32.totalorder %s17, 0
      %p160 = por %p158, %p159
      %p161 = scmp.ne.s32.totalorder %s150, %s153
      %p162 = scmp.eq.s32.totalorder %s22, 1
      %p163 = por %p161, %p162
      %p164 = scmp.ne.s32.totalorder %s153, %s154
      %p165 = scmp.eq.s32.totalorder %s22, 0
      %p166 = por %p164, %p165
      %p167 = scmp.ne.s32.totalorder %s153, %s154
      %p168 = scmp.eq.s32.totalorder %s23, 1
      %p169 = por %p167, %p168
      %p171 = scmp.ne.s32.totalorder %s154, %s170
      %p172 = scmp.eq.s32.totalorder %s23, 0
      %p173 = por %p171, %p172
      %p174 = scmp.le.s32.totalorder 1, %s17
      %p175 = scmp.lt.s32.totalorder %s17, 3
      %p176 = pnand %p174, %p175
      %p177 = pneg %p176
      // Predicated region
      $region9: #{tpu_custom_call.1} parent=5 // pred_check
        _
      $region10: #{tpu_custom_call.1} parent=5 // pred_check_branch
        %179 = sbr.rel (%p176) target = $region12
      $region11: #{tpu_custom_call.1} parent=5 // pred_region
        %s180 = ssub.s32 %s17, 1
        // Predicated region
        $region13: #{tpu_custom_call.1} parent=11 // pred_check
          %p181 = pneg %p110
        $region14: #{tpu_custom_call.1} parent=11 // pred_check_branch
          %183 = sbr.rel (%p181) target = $region16
        $region15: #{tpu_custom_call.1} parent=11 // pred_region
          _
        $region16: #{tpu_custom_call.1} parent=11 // pred_fallthru
          _
      $region12: #{tpu_custom_call.1} parent=5 // pred_fallthru
        _
      %p184 = scmp.lt.s32.totalorder %s17, 2
      // Predicated region
      $region17: #{tpu_custom_call.1} parent=5 // pred_check
        %p185 = pneg %p184
      $region18: #{tpu_custom_call.1} parent=5 // pred_check_branch
        %187 = sbr.rel (%p185) target = $region20
      $region19: #{tpu_custom_call.1} parent=5 // pred_region
        // Predicated region
        $region21: #{tpu_custom_call.1} parent=19 // pred_check
          %p188 = pneg %p51
        $region22: #{tpu_custom_call.1} parent=19 // pred_check_branch
          %190 = sbr.rel (%p188) target = $region24
        $region23: #{tpu_custom_call.1} parent=19 // pred_region
          %s191 = smul.u32 8, %s25
          %s192 = ssub.s32 9, %s191
          %p193 = scmp.lt.s32.totalorder %s192, 8
          %s194 = scalar_select %p193, %s192, 8
          %s195 = smul.u32 64, %s194
          %s196 = smul.u32 %s195, 2
          %p197 = scmp.lt.s32.totalorder %s24, 1
          %s198 = scalar_select %p197, %s24, 1
          %p199 = scmp.lt.s32.totalorder %s191, 8
          %s200 = scalar_select %p199, %s191, 8
          %s201 = smul.addr %s200, 2
          %s202 = smul.addr %s198, 18
          %s203 = sadd.s32 %s201, %s202
          %s204 = smul.addr %s203, 4
          %s205 = scalar_lea.vmem %s0, %s204
          %s206 = smul.u32 8, %s25
          %s207 = ssub.s32 9, %s206
          %p208 = scmp.lt.s32.totalorder %s207, 8
          %s209 = scalar_select %p208, %s207, 8
          %s210 = smul.u32 64, %s209
          %s211 = smul.u32 %s210, 2
        $region24: #{tpu_custom_call.1} parent=19 // pred_fallthru
          _
        // Predicated region
        $region25: #{tpu_custom_call.1} parent=19 // pred_check
          %p212 = pneg %p83
        $region26: #{tpu_custom_call.1} parent=19 // pred_check_branch
          %214 = sbr.rel (%p212) target = $region28
        $region27: #{tpu_custom_call.1} parent=19 // pred_region
          %s215 = smul.u32 %s25, 8
          %s216 = sadd.s32 %s215, 8
          %p217 = scmp.lt.s32.totalorder %s24, 1
          %s218 = scalar_select %p217, %s24, 1
          %p219 = scmp.lt.s32.totalorder %s216, 8
          %s220 = scalar_select %p219, %s216, 8
          %s221 = smul.addr %s220, 2
          %s222 = smul.addr %s218, 18
          %s223 = sadd.s32 %s221, %s222
          %s224 = smul.addr %s223, 4
          %s225 = scalar_lea.vmem %s1, %s224
          %s226 = smul.u32 %s25, 8
          %s227 = sadd.s32 %s226, 8
        $region28: #{tpu_custom_call.1} parent=19 // pred_fallthru
          _
      $region20: #{tpu_custom_call.1} parent=5 // pred_fallthru
        _
      %p228 = scmp.le.s32.totalorder 1, %s17
      %p229 = scmp.lt.s32.totalorder %s17, 3
      %p230 = pnand %p228, %p229
      %p231 = pneg %p230
      // Predicated region
      $region29: #{tpu_custom_call.1} parent=5 // pred_check
        _
      $region30: #{tpu_custom_call.1} parent=5 // pred_check_branch
        %233 = sbr.rel (%p230) target = $region32
      $region31: #{tpu_custom_call.1} parent=5 // pred_region
        %s234 = ssub.s32 %s17, 1
        %s235 = smul.u32 8, %s27
        %s236 = ssub.s32 9, %s235
        %p237 = scmp.lt.s32.totalorder %s236, 8
        %s238 = scalar_select %p237, %s236, 8
        %s239 = smul.u32 64, %s238
        %s240 = smul.u32 %s239, 2
        %p241 = scmp.lt.s32.totalorder %s26, 1
        %s242 = scalar_select %p241, %s26, 1
        %p243 = scmp.lt.s32.totalorder %s235, 8
        %s244 = scalar_select %p243, %s235, 8
        %s245 = smul.addr %s244, 2
        %s246 = smul.addr %s242, 18
        %s247 = sadd.s32 %s245, %s246
        %s248 = smul.addr %s247, 4
        %s249 = scalar_lea.vmem %s0, %s248
        %p250 = pneg %p57
        %p251 = pneg %p54
        %s252 = smul.u32 %s27, 8
        %s253 = sadd.s32 %s252, 8
        %p254 = scmp.lt.s32.totalorder %s26, 1
        %s255 = scalar_select %p254, %s26, 1
        %p256 = scmp.lt.s32.totalorder %s253, 8
        %s257 = scalar_select %p256, %s253, 8
        %s258 = smul.addr %s257, 2
        %s259 = smul.addr %s255, 18
        %s260 = sadd.s32 %s258, %s259
        %s261 = smul.addr %s260, 4
        %s262 = scalar_lea.vmem %s1, %s261
        %p263 = pneg %p89
        %p264 = pneg %p86
        %p265 = pneg %p110
        %p266 = pneg %p107
        %p267 = pneg %p138
        %p268 = pneg %p135
        %s269 = sand.u32 %s125, 1
        %s270 = scalar_lea.sflag [#allocation3], %s269
        %s271 = sand.u32 %s125, 1
        %s272 = smul.addr %s271, 32
        %s273 = scalar_lea.vmem [#allocation2], %s272
        %p274 = pneg %p166
        %p275 = pneg %p163
        %s276 = sand.u32 %s153, 1
        %s277 = scalar_lea.sflag [#allocation5], %s276
        %s278 = sand.u32 %s153, 1
        %s279 = smul.addr %s278, 2
        %s280 = scalar_lea.vmem [#allocation4], %s279
        %s281 = smul.u32 8, %s27
        %s282 = ssub.s32 9, %s281
        %p283 = scmp.lt.s32.totalorder %s282, 8
        %s284 = scalar_select %p283, %s282, 8
        %s285 = smul.u32 64, %s284
        %s286 = smul.u32 %s285, 2
        %p287 = scmp.lt.s32.totalorder %s26, 1
        %s288 = scalar_select %p287, %s26, 1
        %p289 = scmp.lt.s32.totalorder %s281, 8
        %s290 = scalar_select %p289, %s281, 8
        %s291 = smul.addr %s290, 2
        %s292 = smul.addr %s288, 18
        %s293 = sadd.s32 %s291, %s292
        %s294 = smul.addr %s293, 4
        %s295 = scalar_lea.vmem %s0, %s294
        %s296 = smul.u32 8, %s27
        %s297 = ssub.s32 9, %s296
        %p298 = scmp.lt.s32.totalorder %s297, 8
        %s299 = scalar_select %p298, %s297, 8
        %s300 = smul.u32 64, %s299
        %s301 = smul.u32 %s300, 2
        %s302 = smul.u32 %s27, 8
        %s303 = sadd.s32 %s302, 8
        %p304 = scmp.lt.s32.totalorder %s26, 1
        %s305 = scalar_select %p304, %s26, 1
        %p306 = scmp.lt.s32.totalorder %s303, 8
        %s307 = scalar_select %p306, %s303, 8
        %s308 = smul.addr %s307, 2
        %s309 = smul.addr %s305, 18
        %s310 = sadd.s32 %s308, %s309
        %s311 = smul.addr %s310, 4
        %s312 = scalar_lea.vmem %s1, %s311
        %s313 = smul.u32 %s27, 8
        %s314 = sadd.s32 %s313, 8
        %s315 = smul.u32 8, %s27
        %v317 = vld [vmem:[%s295] sm:$0xf]
        %v318 = vld [vmem:[%s295 + $0x4] sm:$0x1]
        %v319 = vld [vmem:[%s295 + $0x8] sm:$0xf]
        %v320 = vld [vmem:[%s295 + $0xc] sm:$0x1]
        %v321 = vld [vmem:[%s295 + $0x10] sm:$0xf]
        %v322 = vld [vmem:[%s295 + $0x14] sm:$0x1]
        %v323 = vld [vmem:[%s295 + $0x18] sm:$0xf]
        %v324 = vld [vmem:[%s295 + $0x1c] sm:$0x1]
        %v325 = vld [vmem:[%s295 + $0x20] sm:$0xf]
        %v326 = vld [vmem:[%s295 + $0x24] sm:$0x1]
        %v327 = vld [vmem:[%s295 + $0x28] sm:$0xf]
        %v328 = vld [vmem:[%s295 + $0x2c] sm:$0x1]
        %v329 = vld [vmem:[%s295 + $0x30] sm:$0xf]
        %v330 = vld [vmem:[%s295 + $0x34] sm:$0x1]
        %v331 = vld [vmem:[%s295 + $0x38] sm:$0xf]
        %v332 = vld [vmem:[%s295 + $0x3c] sm:$0x1]
        %v333 = vld [vmem:[%s312] sm:$0xf]
        %v334 = vld [vmem:[%s312 + $0x4] sm:$0x1]
        %v335 = vld [vmem:[%s2] sm:$0xf]
        %v336 = vld [vmem:[%s2 + $0x4] sm:$0xf]
        %v337 = vld [vmem:[%s2 + $0x8] sm:$0xf]
        %v338 = vld [vmem:[%s2 + $0xc] sm:$0xf]
        %v339 = vld [vmem:[%s2 + $0x10] sm:$0xf]
        %v340 = vld [vmem:[%s2 + $0x14] sm:$0xf]
        %v341 = vld [vmem:[%s2 + $0x18] sm:$0xf]
        %v342 = vld [vmem:[%s2 + $0x1c] sm:$0xf]
        %v343 = vld [vmem:[%s2 + $0x20] sm:$0xf]
        %v344 = vld [vmem:[%s2 + $0x24] sm:$0xf]
        %v345 = vld [vmem:[%s2 + $0x28] sm:$0xf]
        %v346 = vld [vmem:[%s2 + $0x2c] sm:$0xf]
        %v347 = vld [vmem:[%s2 + $0x30] sm:$0xf]
        %v348 = vld [vmem:[%s2 + $0x34] sm:$0xf]
        %v349 = vld [vmem:[%s2 + $0x38] sm:$0xf]
        %v350 = vld [vmem:[%s2 + $0x3c] sm:$0xf]
        %vm351 = vsmask.f32 3328
        %vm352 = vsmask.f32 7440
        %vm353 = vmor %vm351, %vm352
        %v355 = vshrl.u32 %v317, 16
        %v357 = vrot.slane %v355, 4
        %v358 = vshll.u32 %v317, 16
        %v360 = vrot.slane %v358, 5
        %v361 = vor.u32 %v357, %v360
        %v362 = vrot.slane %v361, 4
        %v364 = vshll.u32 %v318, 16
        %v366 = vrot.slane %v364, 5
        %v367 = vsel %vm353, %v362, %v366
        %v369 = vshrl.u32 %v319, 16
        %v371 = vrot.slane %v369, 4
        %v372 = vshll.u32 %v319, 16
        %v374 = vrot.slane %v372, 5
        %v375 = vor.u32 %v371, %v374
        %v376 = vrot.slane %v375, 4
        %v378 = vshll.u32 %v320, 16
        %v380 = vrot.slane %v378, 5
        %v381 = vsel %vm353, %v376, %v380
        %v383 = vshrl.u32 %v321, 16
        %v385 = vrot.slane %v383, 4
        %v386 = vshll.u32 %v321, 16
        %v388 = vrot.slane %v386, 5
        %v389 = vor.u32 %v385, %v388
        %v390 = vrot.slane %v389, 4
        %v392 = vshll.u32 %v322, 16
        %v394 = vrot.slane %v392, 5
        %v395 = vsel %vm353, %v390, %v394
        %v397 = vshrl.u32 %v323, 16
        %v399 = vrot.slane %v397, 4
        %v400 = vshll.u32 %v323, 16
        %v402 = vrot.slane %v400, 5
        %v403 = vor.u32 %v399, %v402
        %v404 = vrot.slane %v403, 4
        %v406 = vshll.u32 %v324, 16
        %v408 = vrot.slane %v406, 5
        %v409 = vsel %vm353, %v404, %v408
        %v411 = vshrl.u32 %v325, 16
        %v413 = vrot.slane %v411, 4
        %v414 = vshll.u32 %v325, 16
        %v416 = vrot.slane %v414, 5
        %v417 = vor.u32 %v413, %v416
        %v418 = vrot.slane %v417, 4
        %v420 = vshll.u32 %v326, 16
        %v422 = vrot.slane %v420, 5
        %v423 = vsel %vm353, %v418, %v422
        %v425 = vshrl.u32 %v327, 16
        %v427 = vrot.slane %v425, 4
        %v428 = vshll.u32 %v327, 16
        %v430 = vrot.slane %v428, 5
        %v431 = vor.u32 %v427, %v430
        %v432 = vrot.slane %v431, 4
        %v434 = vshll.u32 %v328, 16
        %v436 = vrot.slane %v434, 5
        %v437 = vsel %vm353, %v432, %v436
        %v439 = vshrl.u32 %v329, 16
        %v441 = vrot.slane %v439, 4
        %v442 = vshll.u32 %v329, 16
        %v444 = vrot.slane %v442, 5
        %v445 = vor.u32 %v441, %v444
        %v446 = vrot.slane %v445, 4
        %v448 = vshll.u32 %v330, 16
        %v450 = vrot.slane %v448, 5
        %v451 = vsel %vm353, %v446, %v450
        %v453 = vshrl.u32 %v331, 16
        %v455 = vrot.slane %v453, 4
        %v456 = vshll.u32 %v331, 16
        %v458 = vrot.slane %v456, 5
        %v459 = vor.u32 %v455, %v458
        %v460 = vrot.slane %v459, 4
        %v462 = vshll.u32 %v332, 16
        %v464 = vrot.slane %v462, 5
        %v465 = vsel %vm353, %v460, %v464
        %s466 = scalar_lea.vmem %s2, 64
        %v467 = vld [vmem:[%s466] sm:$0xf]
        %v468 = vld [vmem:[%s466 + $0x4] sm:$0xf]
        %v469 = vld [vmem:[%s466 + $0x8] sm:$0xf]
        %v470 = vld [vmem:[%s466 + $0xc] sm:$0xf]
        %v471 = vld [vmem:[%s466 + $0x10] sm:$0xf]
        %v472 = vld [vmem:[%s466 + $0x14] sm:$0xf]
        %v473 = vld [vmem:[%s466 + $0x18] sm:$0xf]
        %v474 = vld [vmem:[%s466 + $0x1c] sm:$0xf]
        %v475 = vld [vmem:[%s466 + $0x20] sm:$0xf]
        %v476 = vld [vmem:[%s466 + $0x24] sm:$0xf]
        %v477 = vld [vmem:[%s466 + $0x28] sm:$0xf]
        %v478 = vld [vmem:[%s466 + $0x2c] sm:$0xf]
        %v479 = vld [vmem:[%s466 + $0x30] sm:$0xf]
        %v480 = vld [vmem:[%s466 + $0x34] sm:$0xf]
        %v481 = vld [vmem:[%s466 + $0x38] sm:$0xf]
        %v482 = vld [vmem:[%s466 + $0x3c] sm:$0xf]
        %v483 = vunpack.c.l.b16 %v367
        %v484 = vunpack.c.l.b16 %v381
        %v485 = vunpack.c.l.b16 %v395
        %v486 = vunpack.c.l.b16 %v409
        %v487 = vunpack.c.l.b16 %v423
        %v488 = vunpack.c.l.b16 %v437
        %v489 = vunpack.c.l.b16 %v451
        %v490 = vunpack.c.l.b16 %v465
        %v491 = vpack.c.b16 %v484, %v483
        %v492 = vpack.c.b16 %v486, %v485
        %v493 = vpack.c.b16 %v488, %v487
        %v494 = vpack.c.b16 %v490, %v489
        %v515 = vunpack.c.l.b16 %v467
        %v516 = vunpack.c.l.b16 %v468
        %v517 = vunpack.c.l.b16 %v469
        %v518 = vunpack.c.l.b16 %v470
        %v519 = vunpack.c.l.b16 %v471
        %v520 = vunpack.c.l.b16 %v472
        %v521 = vunpack.c.l.b16 %v473
        %v522 = vunpack.c.l.b16 %v474
        %v523 = vunpack.c.l.b16 %v475
        %v524 = vunpack.c.l.b16 %v476
        %v525 = vunpack.c.l.b16 %v477
        %v526 = vunpack.c.l.b16 %v478
        %v527 = vunpack.c.l.b16 %v479
        %v528 = vunpack.c.l.b16 %v480
        %v529 = vunpack.c.l.b16 %v481
        %v530 = vunpack.c.l.b16 %v482
        %v531 = vpack.c.b16 %v516, %v515
        %v532 = vpack.c.b16 %v518, %v517
        %v533 = vpack.c.b16 %v520, %v519
        %v534 = vpack.c.b16 %v522, %v521
        %v535 = vpack.c.b16 %v524, %v523
        %v536 = vpack.c.b16 %v526, %v525
        %v537 = vpack.c.b16 %v528, %v527
        %v538 = vpack.c.b16 %v530, %v529
        %547 = vmatprep.subr.bf16.mxu0 0
        %548 = vmatpush1.bf16.msra.mxu0 %v531
        %549 = vmatprep.subr.bf16.mxu0 0
        %550 = vmatpush1.bf16.msra.mxu0 %v532
        %551 = vmatprep.subr.bf16.mxu0 0
        %552 = vmatpush1.bf16.msra.mxu0 %v533
        %553 = vmatprep.subr.bf16.mxu0 0
        %554 = vmatpush1.bf16.msra.mxu0 %v534
        %555 = vmatprep.subr.bf16.mxu0 0
        %556 = vmatpush1.bf16.msra.mxu0 %v535
        %557 = vmatprep.subr.bf16.mxu0 0
        %558 = vmatpush1.bf16.msra.mxu0 %v536
        %559 = vmatprep.subr.bf16.mxu0 0
        %560 = vmatpush1.bf16.msra.mxu0 %v537
        %561 = vmatprep.subr.bf16.mxu0 0
        %562 = vmatpush1.bf16.msra.mxu0 %v538
        %563 = vmatprep.subr.bf16.mxu0 0
        %564 = vmatpush1.bf16.msra.mxu0 0
        %565 = vmatprep.subr.bf16.mxu0 0
        %566 = vmatpush1.bf16.msra.mxu0 0
        %567 = vmatprep.subr.bf16.mxu0 0
        %568 = vmatpush1.bf16.msra.mxu0 0
        %569 = vmatprep.subr.bf16.mxu0 0
        %570 = vmatpush1.bf16.msra.mxu0 0
        %571 = vmatprep.subr.bf16.mxu0 0
        %572 = vmatpush1.bf16.msra.mxu0 0
        %573 = vmatprep.subr.bf16.mxu0 0
        %574 = vmatpush1.bf16.msra.mxu0 0
        %575 = vmatprep.subr.bf16.mxu0 0
        %576 = vmatpush1.bf16.msra.mxu0 0
        %577 = vmatprep.subr.bf16.mxu0 0
        %578 = vmatpush1.bf16.msra.mxu0 0
        %579 = vmatprep.mubr.bf16.mxu0 0
        %580 = vmatmul.mubr.bf16.gmra.mrb[0].mxu0 %v491
        %v581 = vpop.f32.mrb[0].mxu0
        %v582 = vadd.f32 0.0, %v581
        %v583 = vpop.f32.mrb[0].mxu0
        %v584 = vpop.f32.mrb[0].mxu0
        %v585 = vadd.f32 0.0, %v584
        %v586 = vpop.f32.mrb[0].mxu0
        %587 = vmatprep.mubr.bf16.mxu0 0
        %588 = vmatmul.mubr.bf16.gmra.mrb[0].mxu0 %v492
        %v589 = vpop.f32.mrb[0].mxu0
        %v590 = vadd.f32 0.0, %v589
        %v591 = vpop.f32.mrb[0].mxu0
        %v592 = vpop.f32.mrb[0].mxu0
        %v593 = vadd.f32 0.0, %v592
        %v594 = vpop.f32.mrb[0].mxu0
        %595 = vmatprep.mubr.bf16.mxu0 0
        %596 = vmatmul.mubr.bf16.gmra.mrb[0].mxu0 %v493
        %v597 = vpop.f32.mrb[0].mxu0
        %v598 = vadd.f32 0.0, %v597
        %v599 = vpop.f32.mrb[0].mxu0
        %v600 = vpop.f32.mrb[0].mxu0
        %v601 = vadd.f32 0.0, %v600
        %v602 = vpop.f32.mrb[0].mxu0
        %603 = vmatprep.mubr.bf16.mxu0 0
        %604 = vmatmul.mubr.bf16.gmra.mrb[0].mxu0 %v494
        %v605 = vpop.f32.mrb[0].mxu0
        %v606 = vadd.f32 0.0, %v605
        %v607 = vpop.f32.mrb[0].mxu0
        %v608 = vpop.f32.mrb[0].mxu0
        %v609 = vadd.f32 0.0, %v608
        %v610 = vpop.f32.mrb[0].mxu0
        %611 = vdwg.mxu0
        %v620 = vunpack.c.l.b16 %v317
        %v621 = vunpack.c.l.b16 %v319
        %v622 = vunpack.c.l.b16 %v321
        %v623 = vunpack.c.l.b16 %v323
        %v624 = vunpack.c.l.b16 %v325
        %v625 = vunpack.c.l.b16 %v327
        %v626 = vunpack.c.l.b16 %v329
        %v627 = vunpack.c.l.b16 %v331
        %v628 = vpack.c.b16 %v621, %v620
        %v629 = vpack.c.b16 %v623, %v622
        %v630 = vpack.c.b16 %v625, %v624
        %v631 = vpack.c.b16 %v627, %v626
        %v652 = vunpack.c.l.b16 %v335
        %v653 = vunpack.c.l.b16 %v336
        %v654 = vunpack.c.l.b16 %v337
        %v655 = vunpack.c.l.b16 %v338
        %v656 = vunpack.c.l.b16 %v339
        %v657 = vunpack.c.l.b16 %v340
        %v658 = vunpack.c.l.b16 %v341
        %v659 = vunpack.c.l.b16 %v342
        %v660 = vunpack.c.l.b16 %v343
        %v661 = vunpack.c.l.b16 %v344
        %v662 = vunpack.c.l.b16 %v345
        %v663 = vunpack.c.l.b16 %v346
        %v664 = vunpack.c.l.b16 %v347
        %v665 = vunpack.c.l.b16 %v348
        %v666 = vunpack.c.l.b16 %v349
        %v667 = vunpack.c.l.b16 %v350
        %v668 = vpack.c.b16 %v653, %v652
        %v669 = vpack.c.b16 %v655, %v654
        %v670 = vpack.c.b16 %v657, %v656
        %v671 = vpack.c.b16 %v659, %v658
        %v672 = vpack.c.b16 %v661, %v660
        %v673 = vpack.c.b16 %v663, %v662
        %v674 = vpack.c.b16 %v665, %v664
        %v675 = vpack.c.b16 %v667, %v666
        %684 = vmatprep.subr.bf16.mxu0 0
        %685 = vmatpush1.bf16.msra.mxu0 %v668
        %686 = vmatprep.subr.bf16.mxu0 0
        %687 = vmatpush1.bf16.msra.mxu0 %v669
        %688 = vmatprep.subr.bf16.mxu0 0
        %689 = vmatpush1.bf16.msra.mxu0 %v670
        %690 = vmatprep.subr.bf16.mxu0 0
        %691 = vmatpush1.bf16.msra.mxu0 %v671
        %692 = vmatprep.subr.bf16.mxu0 0
        %693 = vmatpush1.bf16.msra.mxu0 %v672
        %694 = vmatprep.subr.bf16.mxu0 0
        %695 = vmatpush1.bf16.msra.mxu0 %v673
        %696 = vmatprep.subr.bf16.mxu0 0
        %697 = vmatpush1.bf16.msra.mxu0 %v674
        %698 = vmatprep.subr.bf16.mxu0 0
        %699 = vmatpush1.bf16.msra.mxu0 %v675
        %700 = vmatprep.subr.bf16.mxu0 0
        %701 = vmatpush1.bf16.msra.mxu0 0
        %702 = vmatprep.subr.bf16.mxu0 0
        %703 = vmatpush1.bf16.msra.mxu0 0
        %704 = vmatprep.subr.bf16.mxu0 0
        %705 = vmatpush1.bf16.msra.mxu0 0
        %706 = vmatprep.subr.bf16.mxu0 0
        %707 = vmatpush1.bf16.msra.mxu0 0
        %708 = vmatprep.subr.bf16.mxu0 0
        %709 = vmatpush1.bf16.msra.mxu0 0
        %710 = vmatprep.subr.bf16.mxu0 0
        %711 = vmatpush1.bf16.msra.mxu0 0
        %712 = vmatprep.subr.bf16.mxu0 0
        %713 = vmatpush1.bf16.msra.mxu0 0
        %714 = vmatprep.subr.bf16.mxu0 0
        %715 = vmatpush1.bf16.msra.mxu0 0
        %716 = vmatprep.mubr.bf16.mxu0 0
        %717 = vmatmul.mubr.bf16.gmra.mrb[0].mxu0 %v628
        %v718 = vpop.f32.mrb[0].mxu0
        %v719 = vadd.f32 %v582, %v718
        %v720 = vpop.f32.mrb[0].mxu0
        %v721 = vpop.f32.mrb[0].mxu0
        %v722 = vadd.f32 %v585, %v721
        %v723 = vpop.f32.mrb[0].mxu0
        %724 = vmatprep.mubr.bf16.mxu0 0
        %725 = vmatmul.mubr.bf16.gmra.mrb[0].mxu0 %v629
        %v726 = vpop.f32.mrb[0].mxu0
        %v727 = vadd.f32 %v590, %v726
        %v728 = vpop.f32.mrb[0].mxu0
        %v729 = vpop.f32.mrb[0].mxu0
        %v730 = vadd.f32 %v593, %v729
        %v731 = vpop.f32.mrb[0].mxu0
        %732 = vmatprep.mubr.bf16.mxu0 0
        %733 = vmatmul.mubr.bf16.gmra.mrb[0].mxu0 %v630
        %v734 = vpop.f32.mrb[0].mxu0
        %v735 = vadd.f32 %v598, %v734
        %v736 = vpop.f32.mrb[0].mxu0
        %v737 = vpop.f32.mrb[0].mxu0
        %v738 = vadd.f32 %v601, %v737
        %v739 = vpop.f32.mrb[0].mxu0
        %740 = vmatprep.mubr.bf16.mxu0 0
        %741 = vmatmul.mubr.bf16.gmra.mrb[0].mxu0 %v631
        %v742 = vpop.f32.mrb[0].mxu0
        %v743 = vadd.f32 %v606, %v742
        %v744 = vpop.f32.mrb[0].mxu0
        %v745 = vpop.f32.mrb[0].mxu0
        %v746 = vadd.f32 %v609, %v745
        %v747 = vpop.f32.mrb[0].mxu0
        %748 = vdwg.mxu0
        %s749 = scalar_lea.vmem %s2, 128
        %v750 = vld [vmem:[%s749] sm:$0xf]
        %v751 = vld [vmem:[%s749 + $0x4] sm:$0xf]
        %v752 = vld [vmem:[%s749 + $0x8] sm:$0xf]
        %v753 = vld [vmem:[%s749 + $0xc] sm:$0xf]
        %v754 = vld [vmem:[%s749 + $0x10] sm:$0xf]
        %v755 = vld [vmem:[%s749 + $0x14] sm:$0xf]
        %v756 = vld [vmem:[%s749 + $0x18] sm:$0xf]
        %v757 = vld [vmem:[%s749 + $0x1c] sm:$0xf]
        %v758 = vld [vmem:[%s749 + $0x20] sm:$0xf]
        %v759 = vld [vmem:[%s749 + $0x24] sm:$0xf]
        %v760 = vld [vmem:[%s749 + $0x28] sm:$0xf]
        %v761 = vld [vmem:[%s749 + $0x2c] sm:$0xf]
        %v762 = vld [vmem:[%s749 + $0x30] sm:$0xf]
        %v763 = vld [vmem:[%s749 + $0x34] sm:$0xf]
        %v764 = vld [vmem:[%s749 + $0x38] sm:$0xf]
        %v765 = vld [vmem:[%s749 + $0x3c] sm:$0xf]
        %v767 = vunpack.c.l.b16 %v333
        %v768 = vpack.c.b16 %v622, %v621
        %v769 = vpack.c.b16 %v624, %v623
        %v770 = vpack.c.b16 %v626, %v625
        %v771 = vpack.c.b16 %v767, %v627
        %v792 = vunpack.c.l.b16 %v750
        %v793 = vunpack.c.l.b16 %v751
        %v794 = vunpack.c.l.b16 %v752
        %v795 = vunpack.c.l.b16 %v753
        %v796 = vunpack.c.l.b16 %v754
        %v797 = vunpack.c.l.b16 %v755
        %v798 = vunpack.c.l.b16 %v756
        %v799 = vunpack.c.l.b16 %v757
        %v800 = vunpack.c.l.b16 %v758
        %v801 = vunpack.c.l.b16 %v759
        %v802 = vunpack.c.l.b16 %v760
        %v803 = vunpack.c.l.b16 %v761
        %v804 = vunpack.c.l.b16 %v762
        %v805 = vunpack.c.l.b16 %v763
        %v806 = vunpack.c.l.b16 %v764
        %v807 = vunpack.c.l.b16 %v765
        %v808 = vpack.c.b16 %v793, %v792
        %v809 = vpack.c.b16 %v795, %v794
        %v810 = vpack.c.b16 %v797, %v796
        %v811 = vpack.c.b16 %v799, %v798
        %v812 = vpack.c.b16 %v801, %v800
        %v813 = vpack.c.b16 %v803, %v802
        %v814 = vpack.c.b16 %v805, %v804
        %v815 = vpack.c.b16 %v807, %v806
        %824 = vmatprep.subr.bf16.mxu0 0
        %825 = vmatpush1.bf16.msra.mxu0 %v808
        %826 = vmatprep.subr.bf16.mxu0 0
        %827 = vmatpush1.bf16.msra.mxu0 %v809
        %828 = vmatprep.subr.bf16.mxu0 0
        %829 = vmatpush1.bf16.msra.mxu0 %v810
        %830 = vmatprep.subr.bf16.mxu0 0
        %831 = vmatpush1.bf16.msra.mxu0 %v811
        %832 = vmatprep.subr.bf16.mxu0 0
        %833 = vmatpush1.bf16.msra.mxu0 %v812
        %834 = vmatprep.subr.bf16.mxu0 0
        %835 = vmatpush1.bf16.msra.mxu0 %v813
        %836 = vmatprep.subr.bf16.mxu0 0
        %837 = vmatpush1.bf16.msra.mxu0 %v814
        %838 = vmatprep.subr.bf16.mxu0 0
        %839 = vmatpush1.bf16.msra.mxu0 %v815
        %840 = vmatprep.subr.bf16.mxu0 0
        %841 = vmatpush1.bf16.msra.mxu0 0
        %842 = vmatprep.subr.bf16.mxu0 0
        %843 = vmatpush1.bf16.msra.mxu0 0
        %844 = vmatprep.subr.bf16.mxu0 0
        %845 = vmatpush1.bf16.msra.mxu0 0
        %846 = vmatprep.subr.bf16.mxu0 0
        %847 = vmatpush1.bf16.msra.mxu0 0
        %848 = vmatprep.subr.bf16.mxu0 0
        %849 = vmatpush1.bf16.msra.mxu0 0
        %850 = vmatprep.subr.bf16.mxu0 0
        %851 = vmatpush1.bf16.msra.mxu0 0
        %852 = vmatprep.subr.bf16.mxu0 0
        %853 = vmatpush1.bf16.msra.mxu0 0
        %854 = vmatprep.subr.bf16.mxu0 0
        %855 = vmatpush1.bf16.msra.mxu0 0
        %856 = vmatprep.mubr.bf16.mxu0 0
        %857 = vmatmul.mubr.bf16.gmra.mrb[0].mxu0 %v768
        %v858 = vpop.f32.mrb[0].mxu0
        %v859 = vadd.f32 0.0, %v858
        %v860 = vpop.f32.mrb[0].mxu0
        %v861 = vpop.f32.mrb[0].mxu0
        %v862 = vadd.f32 0.0, %v861
        %v863 = vpop.f32.mrb[0].mxu0
        %864 = vmatprep.mubr.bf16.mxu0 0
        %865 = vmatmul.mubr.bf16.gmra.mrb[0].mxu0 %v769
        %v866 = vpop.f32.mrb[0].mxu0
        %v867 = vadd.f32 0.0, %v866
        %v868 = vpop.f32.mrb[0].mxu0
        %v869 = vpop.f32.mrb[0].mxu0
        %v870 = vadd.f32 0.0, %v869
        %v871 = vpop.f32.mrb[0].mxu0
        %872 = vmatprep.mubr.bf16.mxu0 0
        %873 = vmatmul.mubr.bf16.gmra.mrb[0].mxu0 %v770
        %v874 = vpop.f32.mrb[0].mxu0
        %v875 = vadd.f32 0.0, %v874
        %v876 = vpop.f32.mrb[0].mxu0
        %v877 = vpop.f32.mrb[0].mxu0
        %v878 = vadd.f32 0.0, %v877
        %v879 = vpop.f32.mrb[0].mxu0
        %880 = vmatprep.mubr.bf16.mxu0 0
        %881 = vmatmul.mubr.bf16.gmra.mrb[0].mxu0 %v771
        %v882 = vpop.f32.mrb[0].mxu0
        %v883 = vadd.f32 0.0, %v882
        %v884 = vpop.f32.mrb[0].mxu0
        %v885 = vpop.f32.mrb[0].mxu0
        %v886 = vadd.f32 0.0, %v885
        %v887 = vpop.f32.mrb[0].mxu0
        %888 = vdwg.mxu0
        %v889 = vadd.f32 %v719, %v859
        %v890 = vadd.f32 %v722, %v862
        %v891 = vadd.f32 %v727, %v867
        %v892 = vadd.f32 %v730, %v870
        %v893 = vadd.f32 %v735, %v875
        %v894 = vadd.f32 %v738, %v878
        %v895 = vadd.f32 %v743, %v883
        %v896 = vadd.f32 %v746, %v886
        %v898 = vshrl.u32 %v333, 16
        %v900 = vrot.slane %v898, 4
        %v901 = vshll.u32 %v333, 16
        %v903 = vrot.slane %v901, 5
        %v904 = vor.u32 %v900, %v903
        %v905 = vrot.slane %v904, 4
        %v907 = vshll.u32 %v334, 16
        %v909 = vrot.slane %v907, 5
        %v910 = vsel %vm353, %v905, %v909
        %s911 = scalar_lea.vmem %s2, 192
        %v912 = vld [vmem:[%s911] sm:$0xf]
        %v913 = vld [vmem:[%s911 + $0x4] sm:$0xf]
        %v914 = vld [vmem:[%s911 + $0x8] sm:$0xf]
        %v915 = vld [vmem:[%s911 + $0xc] sm:$0xf]
        %v916 = vld [vmem:[%s911 + $0x10] sm:$0xf]
        %v917 = vld [vmem:[%s911 + $0x14] sm:$0xf]
        %v918 = vld [vmem:[%s911 + $0x18] sm:$0xf]
        %v919 = vld [vmem:[%s911 + $0x1c] sm:$0xf]
        %v920 = vld [vmem:[%s911 + $0x20] sm:$0xf]
        %v921 = vld [vmem:[%s911 + $0x24] sm:$0xf]
        %v922 = vld [vmem:[%s911 + $0x28] sm:$0xf]
        %v923 = vld [vmem:[%s911 + $0x2c] sm:$0xf]
        %v924 = vld [vmem:[%s911 + $0x30] sm:$0xf]
        %v925 = vld [vmem:[%s911 + $0x34] sm:$0xf]
        %v926 = vld [vmem:[%s911 + $0x38] sm:$0xf]
        %v927 = vld [vmem:[%s911 + $0x3c] sm:$0xf]
        %v928 = vunpack.c.l.b16 %v910
        %v929 = vpack.c.b16 %v485, %v484
        %v930 = vpack.c.b16 %v487, %v486
        %v931 = vpack.c.b16 %v489, %v488
        %v932 = vpack.c.b16 %v928, %v490
        %v953 = vunpack.c.l.b16 %v912
        %v954 = vunpack.c.l.b16 %v913
        %v955 = vunpack.c.l.b16 %v914
        %v956 = vunpack.c.l.b16 %v915
        %v957 = vunpack.c.l.b16 %v916
        %v958 = vunpack.c.l.b16 %v917
        %v959 = vunpack.c.l.b16 %v918
        %v960 = vunpack.c.l.b16 %v919
        %v961 = vunpack.c.l.b16 %v920
        %v962 = vunpack.c.l.b16 %v921
        %v963 = vunpack.c.l.b16 %v922
        %v964 = vunpack.c.l.b16 %v923
        %v965 = vunpack.c.l.b16 %v924
        %v966 = vunpack.c.l.b16 %v925
        %v967 = vunpack.c.l.b16 %v926
        %v968 = vunpack.c.l.b16 %v927
        %v969 = vpack.c.b16 %v954, %v953
        %v970 = vpack.c.b16 %v956, %v955
        %v971 = vpack.c.b16 %v958, %v957
        %v972 = vpack.c.b16 %v960, %v959
        %v973 = vpack.c.b16 %v962, %v961
        %v974 = vpack.c.b16 %v964, %v963
        %v975 = vpack.c.b16 %v966, %v965
        %v976 = vpack.c.b16 %v968, %v967
        %985 = vmatprep.subr.bf16.mxu0 0
        %986 = vmatpush1.bf16.msra.mxu0 %v969
        %987 = vmatprep.subr.bf16.mxu0 0
        %988 = vmatpush1.bf16.msra.mxu0 %v970
        %989 = vmatprep.subr.bf16.mxu0 0
        %990 = vmatpush1.bf16.msra.mxu0 %v971
        %991 = vmatprep.subr.bf16.mxu0 0
        %992 = vmatpush1.bf16.msra.mxu0 %v972
        %993 = vmatprep.subr.bf16.mxu0 0
        %994 = vmatpush1.bf16.msra.mxu0 %v973
        %995 = vmatprep.subr.bf16.mxu0 0
        %996 = vmatpush1.bf16.msra.mxu0 %v974
        %997 = vmatprep.subr.bf16.mxu0 0
        %998 = vmatpush1.bf16.msra.mxu0 %v975
        %999 = vmatprep.subr.bf16.mxu0 0
        %1000 = vmatpush1.bf16.msra.mxu0 %v976
        %1001 = vmatprep.subr.bf16.mxu0 0
        %1002 = vmatpush1.bf16.msra.mxu0 0
        %1003 = vmatprep.subr.bf16.mxu0 0
        %1004 = vmatpush1.bf16.msra.mxu0 0
        %1005 = vmatprep.subr.bf16.mxu0 0
        %1006 = vmatpush1.bf16.msra.mxu0 0
        %1007 = vmatprep.subr.bf16.mxu0 0
        %1008 = vmatpush1.bf16.msra.mxu0 0
        %1009 = vmatprep.subr.bf16.mxu0 0
        %1010 = vmatpush1.bf16.msra.mxu0 0
        %1011 = vmatprep.subr.bf16.mxu0 0
        %1012 = vmatpush1.bf16.msra.mxu0 0
        %1013 = vmatprep.subr.bf16.mxu0 0
        %1014 = vmatpush1.bf16.msra.mxu0 0
        %1015 = vmatprep.subr.bf16.mxu0 0
        %1016 = vmatpush1.bf16.msra.mxu0 0
        %1017 = vmatprep.mubr.bf16.mxu0 0
        %1018 = vmatmul.mubr.bf16.gmra.mrb[0].mxu0 %v929
        %v1019 = vpop.f32.mrb[0].mxu0
        %v1020 = vadd.f32 0.0, %v1019
        %v1021 = vpop.f32.mrb[0].mxu0
        %v1022 = vpop.f32.mrb[0].mxu0
        %v1023 = vadd.f32 0.0, %v1022
        %v1024 = vpop.f32.mrb[0].mxu0
        %1025 = vmatprep.mubr.bf16.mxu0 0
        %1026 = vmatmul.mubr.bf16.gmra.mrb[0].mxu0 %v930
        %v1027 = vpop.f32.mrb[0].mxu0
        %v1028 = vadd.f32 0.0, %v1027
        %v1029 = vpop.f32.mrb[0].mxu0
        %v1030 = vpop.f32.mrb[0].mxu0
        %v1031 = vadd.f32 0.0, %v1030
        %v1032 = vpop.f32.mrb[0].mxu0
        %1033 = vmatprep.mubr.bf16.mxu0 0
        %1034 = vmatmul.mubr.bf16.gmra.mrb[0].mxu0 %v931
        %v1035 = vpop.f32.mrb[0].mxu0
        %v1036 = vadd.f32 0.0, %v1035
        %v1037 = vpop.f32.mrb[0].mxu0
        %v1038 = vpop.f32.mrb[0].mxu0
        %v1039 = vadd.f32 0.0, %v1038
        %v1040 = vpop.f32.mrb[0].mxu0
        %1041 = vmatprep.mubr.bf16.mxu0 0
        %1042 = vmatmul.mubr.bf16.gmra.mrb[0].mxu0 %v932
        %v1043 = vpop.f32.mrb[0].mxu0
        %v1044 = vadd.f32 0.0, %v1043
        %v1045 = vpop.f32.mrb[0].mxu0
        %v1046 = vpop.f32.mrb[0].mxu0
        %v1047 = vadd.f32 0.0, %v1046
        %v1048 = vpop.f32.mrb[0].mxu0
        %1049 = vdwg.mxu0
        %v1050 = vadd.f32 %v889, %v1020
        %v1051 = vadd.f32 %v890, %v1023
        %v1052 = vadd.f32 %v891, %v1028
        %v1053 = vadd.f32 %v892, %v1031
        %v1054 = vadd.f32 %v893, %v1036
        %v1055 = vadd.f32 %v894, %v1039
        %v1056 = vadd.f32 %v895, %v1044
        %v1057 = vadd.f32 %v896, %v1047
        %s1058 = smul.u32 %s27, 8
        %v1059 = vstv %s1058
        %v1060 = vadd.s32 %v1059, 1
        %v1061 = vadd.s32 %v1059, 2
        %v1062 = vadd.s32 %v1059, 3
        %v1063 = vadd.s32 %v1059, 4
        %v1064 = vadd.s32 %v1059, 5
        %v1065 = vadd.s32 %v1059, 6
        %v1066 = vadd.s32 %v1059, 7
        %v1067 = vlaneseq
        %v1068 = vshrl.u32 %v1067, 7
        %vm1069 = vcmp.lt.s32.totalorder %v1059, 7
        %vm1070 = vcmp.lt.s32.totalorder %v1060, 7
        %vm1071 = vcmp.lt.s32.totalorder %v1061, 7
        %vm1072 = vcmp.lt.s32.totalorder %v1062, 7
        %vm1073 = vcmp.lt.s32.totalorder %v1063, 7
        %vm1074 = vcmp.lt.s32.totalorder %v1064, 7
        %vm1075 = vcmp.lt.s32.totalorder %v1065, 7
        %vm1076 = vcmp.lt.s32.totalorder %v1066, 7
        %vm1077 = vcmp.lt.s32.totalorder %v1068, 7
        %vm1078 = vmand %vm1069, %vm1077
        %vm1079 = vmand %vm1070, %vm1077
        %vm1080 = vmand %vm1071, %vm1077
        %vm1081 = vmand %vm1072, %vm1077
        %vm1082 = vmand %vm1073, %vm1077
        %vm1083 = vmand %vm1074, %vm1077
        %vm1084 = vmand %vm1075, %vm1077
        %vm1085 = vmand %vm1076, %vm1077
        %v1086 = vsel %vm1078, 1, 0
        %v1087 = vsel %vm1079, 1, 0
        %v1088 = vsel %vm1080, 1, 0
        %v1089 = vsel %vm1081, 1, 0
        %v1090 = vsel %vm1082, 1, 0
        %v1091 = vsel %vm1083, 1, 0
        %v1092 = vsel %vm1084, 1, 0
        %v1093 = vsel %vm1085, 1, 0
        %vm1094 = vcmp.eq.s32.totalorder %v1086, 1
        %vm1095 = vcmp.eq.s32.totalorder %v1087, 1
        %vm1096 = vcmp.eq.s32.totalorder %v1088, 1
        %vm1097 = vcmp.eq.s32.totalorder %v1089, 1
        %vm1098 = vcmp.eq.s32.totalorder %v1090, 1
        %vm1099 = vcmp.eq.s32.totalorder %v1091, 1
        %vm1100 = vcmp.eq.s32.totalorder %v1092, 1
        %vm1101 = vcmp.eq.s32.totalorder %v1093, 1
        %v1102 = vsel %vm1094, %v1050, 0.0
        %v1103 = vsel %vm1095, %v1051, 0.0
        %v1104 = vsel %vm1096, %v1052, 0.0
        %v1105 = vsel %vm1097, %v1053, 0.0
        %v1106 = vsel %vm1098, %v1054, 0.0
        %v1107 = vsel %vm1099, %v1055, 0.0
        %v1108 = vsel %vm1100, %v1056, 0.0
        %v1109 = vsel %vm1101, %v1057, 0.0
        %v1110 = vpack.c.bf16 %v1102, %v1102
        %v1111 = vpack.c.bf16 %v1103, %v1103
        %v1112 = vpack.c.bf16 %v1104, %v1104
        %v1113 = vpack.c.bf16 %v1105, %v1105
        %v1114 = vpack.c.bf16 %v1106, %v1106
        %v1115 = vpack.c.bf16 %v1107, %v1107
        %v1116 = vpack.c.bf16 %v1108, %v1108
        %v1117 = vpack.c.bf16 %v1109, %v1109
        %1118 = vst [vmem:[%s273] sm:$0xf] %v1110
        %1119 = vst [vmem:[%s273 + $0x4] sm:$0xf] %v1111
        %1120 = vst [vmem:[%s273 + $0x8] sm:$0xf] %v1112
        %1121 = vst [vmem:[%s273 + $0xc] sm:$0xf] %v1113
        %1122 = vst [vmem:[%s273 + $0x10] sm:$0xf] %v1114
        %1123 = vst [vmem:[%s273 + $0x14] sm:$0xf] %v1115
        %1124 = vst [vmem:[%s273 + $0x18] sm:$0xf] %v1116
        %1125 = vst [vmem:[%s273 + $0x1c] sm:$0xf] %v1117
        %s1126 = ssub.s32 7, %s1058
        %p1127 = scmp.lt.s32.totalorder %s1126, 8
        %s1128 = scalar_select %p1127, %s1126, 8
        %s1129 = smul.u32 %s1128, 7
        %s1130 = scvt.s32.f32 %s1129
        %v1131 = vadd.f32 %v1102, %v1103
        %v1132 = vadd.f32 %v1131, %v1104
        %v1133 = vadd.f32 %v1132, %v1105
        %v1134 = vadd.f32 %v1133, %v1106
        %v1135 = vadd.f32 %v1134, %v1107
        %v1136 = vadd.f32 %v1135, %v1108
        %v1137 = vadd.f32 %v1136, %v1109
        %v1138 = vrot.slane %v1137, 4
        %v1139 = vadd.f32 %v1137, %v1138
        %v1140 = vrot.slane %v1139, 2
        %v1141 = vadd.f32 %v1139, %v1140
        %v1142 = vrot.slane %v1141, 1
        %v1143 = vadd.f32 %v1141, %v1142
        %v1144 = vstv %s1130
        %v1145 = vrcp.pop %v1144
        %v1146 = vmul.f32 %v1143, %v1145
        %v1147 = vsub.f32 %v1102, %v1146
        %v1148 = vsub.f32 %v1103, %v1146
        %v1149 = vsub.f32 %v1104, %v1146
        %v1150 = vsub.f32 %v1105, %v1146
        %v1151 = vsub.f32 %v1106, %v1146
        %v1152 = vsub.f32 %v1107, %v1146
        %v1153 = vsub.f32 %v1108, %v1146
        %v1154 = vsub.f32 %v1109, %v1146
        %v1155 = vmul.f32 %v1147, %v1147
        %v1156 = vmul.f32 %v1148, %v1148
        %v1157 = vmul.f32 %v1149, %v1149
        %v1158 = vmul.f32 %v1150, %v1150
        %v1159 = vmul.f32 %v1151, %v1151
        %v1160 = vmul.f32 %v1152, %v1152
        %v1161 = vmul.f32 %v1153, %v1153
        %v1162 = vmul.f32 %v1154, %v1154
        %v1163 = vsel %vm1094, %v1155, 0.0
        %v1164 = vsel %vm1095, %v1156, 0.0
        %v1165 = vsel %vm1096, %v1157, 0.0
        %v1166 = vsel %vm1097, %v1158, 0.0
        %v1167 = vsel %vm1098, %v1159, 0.0
        %v1168 = vsel %vm1099, %v1160, 0.0
        %v1169 = vsel %vm1100, %v1161, 0.0
        %v1170 = vsel %vm1101, %v1162, 0.0
        %v1171 = vadd.f32 %v1163, %v1164
        %v1172 = vadd.f32 %v1171, %v1165
        %v1173 = vadd.f32 %v1172, %v1166
        %v1174 = vadd.f32 %v1173, %v1167
        %v1175 = vadd.f32 %v1174, %v1168
        %v1176 = vadd.f32 %v1175, %v1169
        %v1177 = vadd.f32 %v1176, %v1170
        %v1178 = vrot.slane %v1177, 4
        %v1179 = vadd.f32 %v1177, %v1178
        %v1180 = vrot.slane %v1179, 2
        %v1181 = vadd.f32 %v1179, %v1180
        %v1182 = vrot.slane %v1181, 1
        %v1183 = vadd.f32 %v1181, %v1182
        %vm1184 = vcmask 1040384
        %v1185 = vsel %vm1184, %v1143, %v1183
        %1186 = vst [vmem:[%s280] sm:$0x3] %v1185
        %s1187 = sand.u32 %s125, 1
        %s1188 = scalar_lea.sflag [#allocation3], %s1187
        %s1189 = sand.u32 %s125, 1
        %s1190 = smul.addr %s1189, 32
        %s1191 = scalar_lea.vmem [#allocation2], %s1190
        %s1192 = sand.u32 %s153, 1
        %s1193 = scalar_lea.sflag [#allocation5], %s1192
        %s1194 = sand.u32 %s153, 1
        %s1195 = smul.addr %s1194, 2
        %s1196 = scalar_lea.vmem [#allocation4], %s1195
        // Predicated region
        $region33: #{tpu_custom_call.1} parent=31 // pred_check
          %p1197 = pneg %p135
        $region34: #{tpu_custom_call.1} parent=31 // pred_check_branch
          %1199 = sbr.rel (%p1197) target = $region36
        $region35: #{tpu_custom_call.1} parent=31 // pred_region
          %s1200 = smul.u32 8, %s27
          %s1202 = ssub.s32 512, 512
          %1203 = vsyncadd %s1188, %s1202
          %s1204 = smul.addr %s26, 8
          %s1205 = sadd.s32 %s1200, %s1204
          %s1206 = smul.addr %s1205, 64
          %s1207 = scalar_lea.hbm %s3, %s1206
          %s1208 = sshll.u32 %s1191, 4
          %s1209 = int_to_ptr.vmem [resolvable:$true] %s1208
          %1214 = dma.vmem_to_hbm [thread:$0]  %s1209, 512, %s1207, %s1188, 64, 64, 4
        $region36: #{tpu_custom_call.1} parent=31 // pred_fallthru
          _
        // Predicated region
        $region37: #{tpu_custom_call.1} parent=31 // pred_check
          %p1215 = pneg %p163
        $region38: #{tpu_custom_call.1} parent=31 // pred_check_branch
          %1217 = sbr.rel (%p1215) target = $region40
        $region39: #{tpu_custom_call.1} parent=31 // pred_region
          %s1219 = ssub.s32 32, 32
          %1220 = vsyncadd %s1193, %s1219
          %s1221 = sadd.s32 %s27, %s26
          %s1222 = smul.addr %s1221, 32
          %s1223 = scalar_lea.hbm %s4, %s1222
          %s1225 = sshll.u32 %s1196, 4
          %s1226 = int_to_ptr.vmem [resolvable:$true] %s1225
          %1228 = dma.vmem_to_hbm [thread:$0]  %s1226, 32, %s1223, %s1193
        $region40: #{tpu_custom_call.1} parent=31 // pred_fallthru
          _
      $region32: #{tpu_custom_call.1} parent=5 // pred_fallthru
        _
      %p1229 = scmp.le.s32.totalorder 2, %s17
      // Predicated region
      $region41: #{tpu_custom_call.1} parent=5 // pred_check
        %p1230 = pneg %p1229
      $region42: #{tpu_custom_call.1} parent=5 // pred_check_branch
        %1232 = sbr.rel (%p1230) target = $region44
      $region43: #{tpu_custom_call.1} parent=5 // pred_region
        %s1233 = ssub.s32 %s17, 2
        // Predicated region
        $region45: #{tpu_custom_call.1} parent=43 // pred_check
          %p1234 = pneg %p141
        $region46: #{tpu_custom_call.1} parent=43 // pred_check_branch
          %1236 = sbr.rel (%p1234) target = $region48
        $region47: #{tpu_custom_call.1} parent=43 // pred_region
          %s1237 = sand.u32 %s126, 1
          %s1238 = scalar_lea.sflag [#allocation3], %s1237
          %s1239 = sand.u32 %s126, 1
          %s1240 = smul.addr %s1239, 32
          %s1241 = scalar_lea.vmem [#allocation2], %s1240
          %1242 = dma.done %s1238, 512
        $region48: #{tpu_custom_call.1} parent=43 // pred_fallthru
          _
        // Predicated region
        $region49: #{tpu_custom_call.1} parent=43 // pred_check
          %p1243 = pneg %p169
        $region50: #{tpu_custom_call.1} parent=43 // pred_check_branch
          %1245 = sbr.rel (%p1243) target = $region52
        $region51: #{tpu_custom_call.1} parent=43 // pred_region
          %s1246 = sand.u32 %s154, 1
          %s1247 = scalar_lea.sflag [#allocation5], %s1246
          %s1248 = sand.u32 %s154, 1
          %s1249 = smul.addr %s1248, 2
          %s1250 = scalar_lea.vmem [#allocation4], %s1249
          %1251 = dma.done %s1247, 32
        $region52: #{tpu_custom_call.1} parent=43 // pred_fallthru
          _
      $region44: #{tpu_custom_call.1} parent=5 // pred_fallthru
        _
    $region6: #{tpu_custom_call.1} parent=1 // loop_footer
      %s21 = sadd.s32 1, %s17
    $region7: #{tpu_custom_call.1} parent=1 // loop_footer_branch
      %16 = sbr.rel target = $region3
    $region8: #{tpu_custom_call.1} parent=1 // loop_exit
      _
    %1252 = vsyncpa [#allocation3], 1
    %s1253 = scalar_lea.sflag [#allocation3], 1
    %1254 = vsyncpa %s1253, 1
    %1255 = vsyncpa [#allocation5], 1
    %s1256 = scalar_lea.sflag [#allocation5], 1
    %1257 = vsyncpa %s1256, 1

</llo_original>
